<compile_context>
chip_gen: v7x
topology: tpu7x:2x2x1
jax: 0.10.0
libtpu: 0.0.40
codegen_flags: <defaults>
</compile_context>

<pallas_src>
import functools

import jax
import jax.numpy as jnp
from jax.experimental import pallas as pl
from jax.experimental.pallas import tpu as pltpu

TEMPERATURE = 0.07  # SetCriterion(..., temperature=0.07)


def _round_up(x, m):
    return (x + m - 1) // m * m


# ----------------------------------------------------------------------------
# Kernel 1: row-tiled fused per-point MLP (Linear -> ReLU -> Linear)
# ----------------------------------------------------------------------------
def _point_mlp_kernel(x_ref, w1_ref, b1_ref, w2_ref, b2_ref, o_ref):
    # Weights arrive pre-cast to bf16; activations cast at the dot; f32 accum;
    # bias/ReLU in f32; bf16 store (store-bandwidth-bound kernel).
    # NOTE: on v5e the K=Cin(=6) first contraction could be done as VPU
    # broadcast-FMAs to avoid MXU underfill; the kernel is mem-bound so the
    # dot form is kept for lowering robustness.
    x = x_ref[...].astype(jnp.bfloat16)
    h = jnp.dot(x, w1_ref[...], preferred_element_type=jnp.float32) + b1_ref[...]
    h = jnp.maximum(h, 0.0)
    o = jnp.dot(h.astype(jnp.bfloat16), w2_ref[...],
                preferred_element_type=jnp.float32) + b2_ref[...]
    o_ref[...] = o.astype(o_ref.dtype)


def pallas_point_mlp(x, w1_bf16, b1, w2_bf16, b2, *, tm=1024, min_steps=2):
    """x: [M, Cin] f32 -> [M, D] bf16.

    cdiv row grid; the partial tail block is masked by Pallas (no wrapper pad
    / slice copies).  tm is clamped so the 'parallel' row grid has at least
    `min_steps` steps (keeps both v7x TensorCores busy).
    """
    M, Cin = x.shape
    H = w1_bf16.shape[1]
    D = w2_bf16.shape[1]
    cap = max(8, _round_up(pl.cdiv(M, min_steps), 8))
    tm = max(8, min(_round_up(tm, 8), cap))
    grid = pl.cdiv(M, tm)
    return pl.pallas_call(
        _point_mlp_kernel,
        out_shape=jax.ShapeDtypeStruct((M, D), jnp.bfloat16),
        grid_spec=pltpu.PrefetchScalarGridSpec(
            num_scalar_prefetch=0,
            grid=(grid,),
            in_specs=[
                pl.BlockSpec((tm, Cin), lambda i: (i, 0)),
                pl.BlockSpec((Cin, H), lambda i: (0, 0)),   # resident bf16 weights
                pl.BlockSpec((1, H), lambda i: (0, 0)),
                pl.BlockSpec((H, D), lambda i: (0, 0)),
                pl.BlockSpec((1, D), lambda i: (0, 0)),
            ],
            out_specs=pl.BlockSpec((tm, D), lambda i: (i, 0)),
        ),
        compiler_params=pltpu.CompilerParams(
            dimension_semantics=("parallel",)),
    )(x, w1_bf16, b1, w2_bf16, b2)


# ----------------------------------------------------------------------------
# Kernel 2: fused grounding head (single grid step, everything VMEM-resident)
#   query-seed MLP -> query projection
#   token-embedding gather (one-hot matmul, bf16 operands) -> token projection
#   L2 normalize (f32) -> per-batch q.t^T / temperature
# ----------------------------------------------------------------------------
def _grounding_head_kernel(B, Q, T, V,
                           qseed_ref, ids_ref,
                           w1_ref, b1_ref, w2_ref, b2_ref,
                           wq_ref, bq_ref, wt_ref, bt_ref, emb_ref,
                           pq_ref, pt_ref, sim_ref):
    f32, bf16 = jnp.float32, jnp.bfloat16

    # --- query seed features (recompute tiny B*Q-row MLP; avoids reading
    #     point_feats back from HBM).
    x = qseed_ref[...].astype(bf16)                                   # (BQ, Cin)
    h = jnp.dot(x, w1_ref[...], preferred_element_type=f32) + b1_ref[...]
    h = jnp.maximum(h, 0.0)
    qf = jnp.dot(h.astype(bf16), w2_ref[...],
                 preferred_element_type=f32) + b2_ref[...]            # (BQ, F)
    pq = jnp.dot(qf.astype(bf16), wq_ref[...],
                 preferred_element_type=f32) + bq_ref[...]            # (BQ, Dc)

    # --- token features: in-VMEM embedding lookup as an exact one-hot matmul
    #     (bf16 operands feed the MXU natively; one-hot is exact in bf16).
    #     TODO(synk): for real vocab sizes on v7x (64 MiB VMEM), switch to a
    #     DMA row-gather (scalar-prefetch ids) instead of a resident table.
    ids = ids_ref[...]                                                # (BT, 1) i32
    iota = jax.lax.broadcasted_iota(jnp.int32, (B * T, V), 1)
    onehot = jnp.where(iota == ids, 1.0, 0.0).astype(bf16)            # (BT, V)
    tf = jnp.dot(onehot, emb_ref[...], preferred_element_type=f32)    # (BT, F)
    pt = jnp.dot(tf.astype(bf16), wt_ref[...],
                 preferred_element_type=f32) + bt_ref[...]            # (BT, Dc)

    # --- L2 normalize in f32; temperature-scaled contrastive logits in f32
    #     (keeps the x14.3 scale from amplifying low-precision rounding).
    qn = pq * jax.lax.rsqrt(jnp.sum(pq * pq, axis=-1, keepdims=True) + 1e-12)
    tn = pt * jax.lax.rsqrt(jnp.sum(pt * pt, axis=-1, keepdims=True) + 1e-12)

    # Store the *normalized* projections (BUTD-DETR-style convention expected
    # by the contrastive_align criterion).
    pq_ref[...] = qn
    pt_ref[...] = tn

    inv_temp = 1.0 / TEMPERATURE
    for b in range(B):  # B is small & static -> unrolled block-diagonal sim
        qb = qn[b * Q:(b + 1) * Q, :]                                 # (Q, Dc)
        tb = tn[b * T:(b + 1) * T, :]                                 # (T, Dc)
        sim_b = jax.lax.dot_general(qb, tb, (((1,), (1,)), ((), ())),
                                    preferred_element_type=f32)       # (Q, T)
        sim_ref[b] = sim_b * inv_temp


def pallas_grounding_head(q_seed, token_ids, w1, b1, w2, b2,
                          wq, bq, wt, bt, emb, *, B, Q, T):
    BQ, Cin = q_seed.shape
    BT = token_ids.shape[0]
    H = w1.shape[1]
    F = w2.shape[1]
    Dc = wq.shape[1]
    V = emb.shape[0]
    kernel = functools.partial(_grounding_head_kernel, B, Q, T, V)

    def full(shape):
        return pl.BlockSpec(shape, lambda i: (0,) * len(shape))

    return pl.pallas_call(
        kernel,
        out_shape=(jax.ShapeDtypeStruct((BQ, Dc), jnp.float32),
                   jax.ShapeDtypeStruct((BT, Dc), jnp.float32),
                   jax.ShapeDtypeStruct((B, Q, T), jnp.float32)),
        grid_spec=pltpu.PrefetchScalarGridSpec(
            num_scalar_prefetch=0,
            grid=(1,),
            in_specs=[
                full((BQ, Cin)),          # query seed points
                full((BT, 1)),            # token ids
                full((Cin, H)), full((1, H)),
                full((H, F)), full((1, F)),
                full((F, Dc)), full((1, Dc)),
                full((F, Dc)), full((1, Dc)),
                full((V, F)),             # token embedding table (bf16, VMEM gather)
            ],
            out_specs=[full((BQ, Dc)), full((BT, Dc)), full((B, Q, T))],
        ),
        compiler_params=pltpu.CompilerParams(
            dimension_semantics=("arbitrary",)),
    )(q_seed, token_ids, w1, b1, w2, b2, wq, bq, wt, bt, emb)


# ----------------------------------------------------------------------------
# Synthetic backbone + DefaultGrounder forward
# ----------------------------------------------------------------------------
def init_params(key, *, c_in=6, hidden=128, feat=128, d_contrast=64,
                vocab=256, n_queries=8):
    ks = jax.random.split(key, 8)
    s = lambda k, shape, fan: (jax.random.normal(k, shape, jnp.float32)
                               * (1.0 / jnp.sqrt(fan)))
    return {
        "w1": s(ks[0], (c_in, hidden), c_in),
        "b1": jnp.zeros((1, hidden), jnp.float32),
        "w2": s(ks[1], (hidden, feat), hidden),
        "b2": jnp.zeros((1, feat), jnp.float32),
        "wq": s(ks[2], (feat, d_contrast), feat),
        "bq": jnp.zeros((1, d_contrast), jnp.float32),
        "wt": s(ks[3], (feat, d_contrast), feat),
        "bt": jnp.zeros((1, d_contrast), jnp.float32),
        "token_emb": s(ks[4], (vocab, feat), feat),
        "n_queries": n_queries,
    }


def backbone_forward(params, inputs, *, tm=1024):
    """Synthetic grounding backbone: per-point MLP + fused grounding head."""
    pc = inputs["point_clouds"]              # [B, N, C] float32
    tokens = inputs["text"]                  # [B, T] int32 token ids
    B, N, C = pc.shape
    T = tokens.shape[1]
    Q = params["n_queries"]
    F = params["w2"].shape[1]
    Dc = params["wq"].shape[1]
    V = params["token_emb"].shape[0]

    # Pre-cast MXU operands to bf16 once (half the resident-weight VMEM / DMA,
    # no per-grid-step cast work).  Biases and accumulation stay f32.
    w1b = params["w1"].astype(jnp.bfloat16)
    w2b = params["w2"].astype(jnp.bfloat16)
    wqb = params["wq"].astype(jnp.bfloat16)
    wtb = params["wt"].astype(jnp.bfloat16)
    embb = params["token_emb"].astype(jnp.bfloat16)

    # (1) Per-point features — one row-tiled Pallas kernel (parallel grid,
    #     masked tail block, bf16 output).
    point_feats = pallas_point_mlp(
        pc.reshape(B * N, C), w1b, params["b1"], w2b, params["b2"],
        tm=tm).reshape(B, N, F)

    # (2) Grounding head — one single-step Pallas kernel.  It re-derives the
    # Q query-seed features from the raw seed points (FPS stand-in: first Q
    # points per batch; glue only), gathers token embeddings in VMEM,
    # projects queries/tokens, and emits temperature-scaled contrastive
    # logits — no intermediate touches HBM.
    q_seed = pc[:, :Q, :].reshape(B * Q, C)
    # Clamp ids so an out-of-vocab token selects a valid row rather than a
    # silent all-zero one-hot row.
    token_ids = jnp.clip(tokens.reshape(B * T, 1).astype(jnp.int32), 0, V - 1)
    proj_queries, proj_tokens, sim_logits = pallas_grounding_head(
        q_seed, token_ids,
        w1b, params["b1"], w2b, params["b2"],
        wqb, params["bq"], wtb, params["bt"], embb, B=B, Q=Q, T=T)

    return {
        "point_features": point_feats,
        "proj_queries": proj_queries.reshape(B, Q, Dc),
        "proj_tokens": proj_tokens.reshape(B, T, Dc),
        "sem_match_logits": sim_logits,
    }


def default_grounder_forward(params, input_dict, training=False, *, tm=1024):
    # Mirrors DefaultGrounder.forward: repackage keys, float-cast point clouds.
    inputs = {
        "point_clouds": input_dict["point_clouds"].astype(jnp.float32),
        "text": input_dict["utterances"],
        "det_boxes": input_dict["all_detected_boxes"],
        "det_bbox_label_mask": input_dict["all_detected_bbox_label_mask"],
        "det_class_ids": input_dict["all_detected_class_ids"],
        "superpoint": input_dict["superpoint"],
        "offset": input_dict["offset"],
        "source_xzy": input_dict["source_xzy"],
    }
    end_points = backbone_forward(params, inputs, tm=tm)
    end_points.update(input_dict)
    if training:
        # TODO(synk): compute_hungarian_loss / SetCriterion require
        # scipy.optimize.linear_sum_assignment (sequential Hungarian algorithm)
        # which has no clean Pallas equivalent; only the eval path is provided.
        raise NotImplementedError("Hungarian-matching training loss not implemented")
    # self.set_criterion.eval() is a mode flag only -> no-op here.
    return end_points


# ----------------------------------------------------------------------------
if __name__ == "__main__":
    key = jax.random.PRNGKey(0)
    kp, k0, k1, k2, k3, k4 = jax.random.split(key, 6)

    B, N, C = 2, 200, 6           # points: xyz + color (N not a tile multiple)
    T = 16                        # text tokens
    NDET = 8                      # detected boxes

    params = init_params(kp, c_in=C)

    input_dict = {
        "point_clouds": jax.random.normal(k0, (B, N, C), jnp.float32),
        "utterances": jax.random.randint(k1, (B, T), 0, 256, jnp.int32),
        "all_detected_boxes": jax.random.normal(k2, (B, NDET, 6), jnp.float32),
        "all_detected_bbox_label_mask": jnp.ones((B, NDET), jnp.bool_),
        "all_detected_class_ids": jax.random.randint(k3, (B, NDET), 0, 18, jnp.int32),
        "superpoint": jax.random.randint(k4, (B, N), 0, 32, jnp.int32),
        "offset": jnp.array([N, 2 * N], jnp.int32),
        "source_xzy": jax.random.normal(k0, (B, N, 3), jnp.float32),
    }

    # tm=128 here exercises the multi-step parallel grid + masked tail block at
    # small shapes (400 rows -> 4 steps, last step only 16 valid rows);
    # production default is tm=1024 (clamped to keep >= 2 grid steps).
    end_points = default_grounder_forward(params, input_dict, training=False, tm=128)
    jax.block_until_ready(end_points["sem_match_logits"])
    jax.block_until_ready(end_points["point_features"])

    assert end_points["point_features"].shape == (B, N, 128)
    assert end_points["point_features"].dtype == jnp.bfloat16
    assert end_points["proj_queries"].shape == (B, 8, 64)
    assert end_points["proj_tokens"].shape == (B, T, 64)
    assert end_points["sem_match_logits"].shape == (B, 8, T)
    assert "point_clouds" in end_points  # end_points.update(input_dict)
    print("KERNEL_OK")
</pallas_src>

<mosaic_0001>
module attributes {stable_mosaic.version = 11 : i64} {
  func.func @_point_mlp_kernel(%arg0: i32, %arg1: memref<128x6xf32, #tpu.memory_space<vmem>>, %arg2: memref<6x128xbf16, #tpu.memory_space<vmem>>, %arg3: memref<1x128xf32, #tpu.memory_space<vmem>>, %arg4: memref<128x128xbf16, #tpu.memory_space<vmem>>, %arg5: memref<1x128xf32, #tpu.memory_space<vmem>>, %arg6: memref<128x128xbf16, #tpu.memory_space<vmem>>) attributes {dimension_semantics = [#tpu.dimension_semantics<parallel>], iteration_bounds = array<i64: 4>, scalar_prefetch = 0 : i64, scratch_operands = 0 : i64, tpu.core_type = #tpu.core_type<tc>, window_params = [{transform_indices = @transform_0, window_bounds = array<i64: 128, 6>}, {pipeline_mode = #tpu.pipeline_mode<synchronous>, transform_indices = @transform_1, window_bounds = array<i64: 6, 128>}, {pipeline_mode = #tpu.pipeline_mode<synchronous>, transform_indices = @transform_2, window_bounds = array<i64: 1, 128>}, {pipeline_mode = #tpu.pipeline_mode<synchronous>, transform_indices = @transform_3, window_bounds = array<i64: 128, 128>}, {pipeline_mode = #tpu.pipeline_mode<synchronous>, transform_indices = @transform_4, window_bounds = array<i64: 1, 128>}, {transform_indices = @transform_5, window_bounds = array<i64: 128, 128>}]} {
    %c0 = arith.constant 0 : index
    %c0_0 = arith.constant 0 : index
    %0 = vector.load %arg1[%c0, %c0_0] : memref<128x6xf32, #tpu.memory_space<vmem>>, vector<128x6xf32>
    %1 = arith.truncf %0 : vector<128x6xf32> to vector<128x6xbf16>
    %c0_1 = arith.constant 0 : index
    %c0_2 = arith.constant 0 : index
    %2 = vector.load %arg2[%c0_1, %c0_2] : memref<6x128xbf16, #tpu.memory_space<vmem>>, vector<6x128xbf16>
    %cst = arith.constant dense<0.000000e+00> : vector<128x128xf32>
    %3 = tpu.matmul %1, %2, %cst {dimension_numbers = #tpu.dot_dimension_numbers<[1], [0], [0], [1], [0, 0, 1, 1], [], []>} : vector<128x6xbf16>, vector<6x128xbf16>, vector<128x128xf32> -> vector<128x128xf32>
    %c0_3 = arith.constant 0 : index
    %c0_4 = arith.constant 0 : index
    %4 = vector.load %arg3[%c0_3, %c0_4] : memref<1x128xf32, #tpu.memory_space<vmem>>, vector<1x128xf32>
    %5 = vector.broadcast %4 : vector<1x128xf32> to vector<128x128xf32>
    %6 = arith.addf %3, %5 : vector<128x128xf32>
    %cst_5 = arith.constant 0.000000e+00 : f32
    %7 = vector.broadcast %cst_5 : f32 to vector<128x128xf32>
    %8 = arith.maximumf %6, %7 : vector<128x128xf32>
    %9 = arith.truncf %8 : vector<128x128xf32> to vector<128x128xbf16>
    %c0_6 = arith.constant 0 : index
    %c0_7 = arith.constant 0 : index
    %10 = vector.load %arg4[%c0_6, %c0_7] : memref<128x128xbf16, #tpu.memory_space<vmem>>, vector<128x128xbf16>
    %cst_8 = arith.constant dense<0.000000e+00> : vector<128x128xf32>
    %11 = tpu.matmul %9, %10, %cst_8 {dimension_numbers = #tpu.dot_dimension_numbers<[1], [0], [0], [1], [0, 0, 1, 1], [], []>} : vector<128x128xbf16>, vector<128x128xbf16>, vector<128x128xf32> -> vector<128x128xf32>
    %c0_9 = arith.constant 0 : index
    %c0_10 = arith.constant 0 : index
    %12 = vector.load %arg5[%c0_9, %c0_10] : memref<1x128xf32, #tpu.memory_space<vmem>>, vector<1x128xf32>
    %13 = vector.broadcast %12 : vector<1x128xf32> to vector<128x128xf32>
    %14 = arith.addf %11, %13 : vector<128x128xf32>
    %15 = arith.truncf %14 : vector<128x128xf32> to vector<128x128xbf16>
    %c0_11 = arith.constant 0 : index
    %c0_12 = arith.constant 0 : index
    %16 = vector.load %arg6[%c0_11, %c0_12] : memref<128x128xbf16, #tpu.memory_space<vmem>>, vector<128x128xbf16>
    tpu.vector_store %arg6[%c0_11, %c0_12], %15 {strides = array<i32>} : memref<128x128xbf16, #tpu.memory_space<vmem>>, vector<128x128xbf16>,
    return
  }
  func.func @transform_0(%arg0: i32) -> (i32, i32) {
    %c0_i32 = arith.constant 0 : i32
    %c0_i32_0 = arith.constant 0 : i32
    return %arg0, %c0_i32 : i32, i32
  }
  func.func @transform_1(%arg0: i32) -> (i32, i32) {
    %c0_i32 = arith.constant 0 : i32
    %c0_i32_0 = arith.constant 0 : i32
    %c0_i32_1 = arith.constant 0 : i32
    return %c0_i32, %c0_i32_0 : i32, i32
  }
  func.func @transform_2(%arg0: i32) -> (i32, i32) {
    %c0_i32 = arith.constant 0 : i32
    %c0_i32_0 = arith.constant 0 : i32
    %c0_i32_1 = arith.constant 0 : i32
    return %c0_i32, %c0_i32_0 : i32, i32
  }
  func.func @transform_3(%arg0: i32) -> (i32, i32) {
    %c0_i32 = arith.constant 0 : i32
    %c0_i32_0 = arith.constant 0 : i32
    %c0_i32_1 = arith.constant 0 : i32
    return %c0_i32, %c0_i32_0 : i32, i32
  }
  func.func @transform_4(%arg0: i32) -> (i32, i32) {
    %c0_i32 = arith.constant 0 : i32
    %c0_i32_0 = arith.constant 0 : i32
    %c0_i32_1 = arith.constant 0 : i32
    return %c0_i32, %c0_i32_0 : i32, i32
  }
  func.func @transform_5(%arg0: i32) -> (i32, i32) {
    %c0_i32 = arith.constant 0 : i32
    %c0_i32_0 = arith.constant 0 : i32
    return %arg0, %c0_i32 : i32, i32
  }
}

</mosaic_0001>

<llo_original>
// kernel: tpu_custom_call.1
$region0: #{tpu_custom_call.1}
  #allocation0 [shape = 'u32[]', space=smem, size = 0x4, offset = 0x4, fixed_abs, tag = 'smem constant byte address 0x4 - core index']
  #allocation1 [shape = 'u32[144,128]{1,0:T(1,128)}', space=vmem, size = 0x12000, scoped, tag = 'internal scratch']
  %s0 = inlined_call_operand.vmem [shape: f32[400,6], index: 0, kind: input, shape index: {}]
  %s1 = inlined_call_operand.vmem [shape: bf16[6,128], index: 1, kind: input, shape index: {}]
  %s2 = inlined_call_operand.vmem [shape: f32[1,128], index: 2, kind: input, shape index: {}]
  %s3 = inlined_call_operand.vmem [shape: bf16[128,128], index: 3, kind: input, shape index: {}]
  %s4 = inlined_call_operand.vmem [shape: f32[1,128], index: 4, kind: input, shape index: {}]
  %s5 = inlined_call_operand.hbm [shape: bf16[400,128], index: 5, kind: output, shape index: {}]
  %s6 = sld [smem:[#allocation0]]
  $region53: #{tpu_custom_call.1} parent=0
    _
  %s8 = ssub.s32 1, %s6
  %s9 = scalar_select 0, %s8, %s6
  $region1: #{tpu_custom_call.1} parent=0
    #allocation2 [shape = 'u8[65536]{0}', space=vmem, size = 0x10000, scoped, tag = 'output window, operand 0']
    #allocation3 [shape = 's32[2]{0}', space=sflag, size = 0x8, scoped, tag = 'scoped memory for tpu_custom_call.1']
    %10 = vsyncpa [#allocation3], 0
    %s11 = scalar_lea.sflag [#allocation3], 1
    %12 = vsyncpa %s11, 0
    loop: start=0, step=1, limit=6
    $region2: #{tpu_custom_call.1} parent=1 // loop_pre_header
      _
    $region3: #{tpu_custom_call.1} parent=1 // loop_header
      %s14 = sphi 0, %s18
      %p15 = scmp.ge.s32.totalorder %s14, 6
      %s24 = sphi 0, %s26
      %s27 = sphi 0, %s24
      %s28 = sphi 0, %s27
      %s44 = sphi 0, %s28
      %s48 = sphi 0, %s48
      %s50 = sphi 0, %s48
      %s51 = sphi 0, %s50
      %s65 = sphi 0, %s51
      %s69 = sphi 0, %s69
      %s71 = sphi 0, %s69
      %s72 = sphi 0, %s71
      %s86 = sphi 0, %s72
      %s90 = sphi 0, %s90
      %s92 = sphi 0, %s90
      %s93 = sphi 0, %s92
      %s107 = sphi 0, %s93
      %s111 = sphi 0, %s111
      %s113 = sphi 0, %s111
      %s114 = sphi 0, %s113
      %s128 = sphi 0, %s114
      %s134 = sphi 0, %s136
      %s137 = sphi 0, %s134
      %s138 = sphi 0, %s137
      %s154 = sphi 0, %s138
    $region4: #{tpu_custom_call.1} parent=1 // loop_header_branch
      %17 = sbr.rel (%p15) target = $region8
    $region5: #{tpu_custom_call.1} parent=1 // loop_body
      %s19 = ssub.s32 %s14, 1
      %s20 = ssub.s32 %s14, 2
      %s21 = sadd.s32 %s14, 1
      %s22 = ssub.s32 %s14, %s21
      %p23 = scmp.eq.s32.totalorder %s22, 0
      %s25 = sadd.s32 %s24, 1
      %s26 = scalar_select %p23, %s24, %s25
      %p29 = pneg %p23
      %p30 = scmp.eq.s32.totalorder %s14, 3
      %p31 = por %p29, %p30
      %p32 = scmp.ne.s32.totalorder %s24, %s27
      %p33 = scmp.eq.s32.totalorder %s14, 0
      %p34 = por %p32, %p33
      %p35 = scmp.ne.s32.totalorder %s24, %s27
      %p36 = scmp.eq.s32.totalorder %s19, 3
      %p37 = por %p35, %p36
      %p38 = scmp.ne.s32.totalorder %s27, %s28
      %p39 = scmp.eq.s32.totalorder %s19, 0
      %p40 = por %p38, %p39
      %p41 = scmp.ne.s32.totalorder %s27, %s28
      %p42 = scmp.eq.s32.totalorder %s20, 3
      %p43 = por %p41, %p42
      %p45 = scmp.ne.s32.totalorder %s28, %s44
      %p46 = scmp.eq.s32.totalorder %s20, 0
      %p47 = por %p45, %p46
      %s49 = sadd.s32 %s48, 1
      %p52 = scmp.eq.s32.totalorder %s14, 3
      %p53 = scmp.ne.s32.totalorder %s48, %s50
      %p54 = scmp.eq.s32.totalorder %s14, 0
      %p55 = por %p53, %p54
      %p56 = scmp.ne.s32.totalorder %s48, %s50
      %p57 = scmp.eq.s32.totalorder %s19, 3
      %p58 = por %p56, %p57
      %p59 = scmp.ne.s32.totalorder %s50, %s51
      %p60 = scmp.eq.s32.totalorder %s19, 0
      %p61 = por %p59, %p60
      %p62 = scmp.ne.s32.totalorder %s50, %s51
      %p63 = scmp.eq.s32.totalorder %s20, 3
      %p64 = por %p62, %p63
      %p66 = scmp.ne.s32.totalorder %s51, %s65
      %p67 = scmp.eq.s32.totalorder %s20, 0
      %p68 = por %p66, %p67
      %s70 = sadd.s32 %s69, 1
      %p73 = scmp.eq.s32.totalorder %s14, 3
      %p74 = scmp.ne.s32.totalorder %s69, %s71
      %p75 = scmp.eq.s32.totalorder %s14, 0
      %p76 = por %p74, %p75
      %p77 = scmp.ne.s32.totalorder %s69, %s71
      %p78 = scmp.eq.s32.totalorder %s19, 3
      %p79 = por %p77, %p78
      %p80 = scmp.ne.s32.totalorder %s71, %s72
      %p81 = scmp.eq.s32.totalorder %s19, 0
      %p82 = por %p80, %p81
      %p83 = scmp.ne.s32.totalorder %s71, %s72
      %p84 = scmp.eq.s32.totalorder %s20, 3
      %p85 = por %p83, %p84
      %p87 = scmp.ne.s32.totalorder %s72, %s86
      %p88 = scmp.eq.s32.totalorder %s20, 0
      %p89 = por %p87, %p88
      %s91 = sadd.s32 %s90, 1
      %p94 = scmp.eq.s32.totalorder %s14, 3
      %p95 = scmp.ne.s32.totalorder %s90, %s92
      %p96 = scmp.eq.s32.totalorder %s14, 0
      %p97 = por %p95, %p96
      %p98 = scmp.ne.s32.totalorder %s90, %s92
      %p99 = scmp.eq.s32.totalorder %s19, 3
      %p100 = por %p98, %p99
      %p101 = scmp.ne.s32.totalorder %s92, %s93
      %p102 = scmp.eq.s32.totalorder %s19, 0
      %p103 = por %p101, %p102
      %p104 = scmp.ne.s32.totalorder %s92, %s93
      %p105 = scmp.eq.s32.totalorder %s20, 3
      %p106 = por %p104, %p105
      %p108 = scmp.ne.s32.totalorder %s93, %s107
      %p109 = scmp.eq.s32.totalorder %s20, 0
      %p110 = por %p108, %p109
      %s112 = sadd.s32 %s111, 1
      %p115 = scmp.eq.s32.totalorder %s14, 3
      %p116 = scmp.ne.s32.totalorder %s111, %s113
      %p117 = scmp.eq.s32.totalorder %s14, 0
      %p118 = por %p116, %p117
      %p119 = scmp.ne.s32.totalorder %s111, %s113
      %p120 = scmp.eq.s32.totalorder %s19, 3
      %p121 = por %p119, %p120
      %p122 = scmp.ne.s32.totalorder %s113, %s114
      %p123 = scmp.eq.s32.totalorder %s19, 0
      %p124 = por %p122, %p123
      %p125 = scmp.ne.s32.totalorder %s113, %s114
      %p126 = scmp.eq.s32.totalorder %s20, 3
      %p127 = por %p125, %p126
      %p129 = scmp.ne.s32.totalorder %s114, %s128
      %p130 = scmp.eq.s32.totalorder %s20, 0
      %p131 = por %p129, %p130
      %s132 = ssub.s32 %s14, %s21
      %p133 = scmp.eq.s32.totalorder %s132, 0
      %s135 = sadd.s32 %s134, 1
      %s136 = scalar_select %p133, %s134, %s135
      %p139 = pneg %p133
      %p140 = scmp.eq.s32.totalorder %s14, 3
      %p141 = por %p139, %p140
      %p142 = scmp.ne.s32.totalorder %s134, %s137
      %p143 = scmp.eq.s32.totalorder %s14, 0
      %p144 = por %p142, %p143
      %p145 = scmp.ne.s32.totalorder %s134, %s137
      %p146 = scmp.eq.s32.totalorder %s19, 3
      %p147 = por %p145, %p146
      %p148 = scmp.ne.s32.totalorder %s137, %s138
      %p149 = scmp.eq.s32.totalorder %s19, 0
      %p150 = por %p148, %p149
      %p151 = scmp.ne.s32.totalorder %s137, %s138
      %p152 = scmp.eq.s32.totalorder %s20, 3
      %p153 = por %p151, %p152
      %p155 = scmp.ne.s32.totalorder %s138, %s154
      %p156 = scmp.eq.s32.totalorder %s20, 0
      %p157 = por %p155, %p156
      %p158 = scmp.le.s32.totalorder 1, %s14
      %p159 = scmp.lt.s32.totalorder %s14, 5
      %p160 = pnand %p158, %p159
      %p161 = pneg %p160
      // Predicated region
      $region9: #{tpu_custom_call.1} parent=5 // pred_check
        _
      $region10: #{tpu_custom_call.1} parent=5 // pred_check_branch
        %163 = sbr.rel (%p160) target = $region12
      $region11: #{tpu_custom_call.1} parent=5 // pred_region
        %s164 = ssub.s32 %s14, 1
        // Predicated region
        $region13: #{tpu_custom_call.1} parent=11 // pred_check
          %p165 = pneg %p61
        $region14: #{tpu_custom_call.1} parent=11 // pred_check_branch
          %167 = sbr.rel (%p165) target = $region16
        $region15: #{tpu_custom_call.1} parent=11 // pred_region
          _
        $region16: #{tpu_custom_call.1} parent=11 // pred_fallthru
          _
        // Predicated region
        $region17: #{tpu_custom_call.1} parent=11 // pred_check
          %p168 = pneg %p82
        $region18: #{tpu_custom_call.1} parent=11 // pred_check_branch
          %170 = sbr.rel (%p168) target = $region20
        $region19: #{tpu_custom_call.1} parent=11 // pred_region
          _
        $region20: #{tpu_custom_call.1} parent=11 // pred_fallthru
          _
        // Predicated region
        $region21: #{tpu_custom_call.1} parent=11 // pred_check
          %p171 = pneg %p103
        $region22: #{tpu_custom_call.1} parent=11 // pred_check_branch
          %173 = sbr.rel (%p171) target = $region24
        $region23: #{tpu_custom_call.1} parent=11 // pred_region
          _
        $region24: #{tpu_custom_call.1} parent=11 // pred_fallthru
          _
        // Predicated region
        $region25: #{tpu_custom_call.1} parent=11 // pred_check
          %p174 = pneg %p124
        $region26: #{tpu_custom_call.1} parent=11 // pred_check_branch
          %176 = sbr.rel (%p174) target = $region28
        $region27: #{tpu_custom_call.1} parent=11 // pred_region
          _
        $region28: #{tpu_custom_call.1} parent=11 // pred_fallthru
          _
      $region12: #{tpu_custom_call.1} parent=5 // pred_fallthru
        _
      %p177 = scmp.lt.s32.totalorder %s14, 4
      // Predicated region
      $region29: #{tpu_custom_call.1} parent=5 // pred_check
        %p178 = pneg %p177
      $region30: #{tpu_custom_call.1} parent=5 // pred_check_branch
        %180 = sbr.rel (%p178) target = $region32
      $region31: #{tpu_custom_call.1} parent=5 // pred_region
        // Predicated region
        $region33: #{tpu_custom_call.1} parent=31 // pred_check
          %p181 = pneg %p34
        $region34: #{tpu_custom_call.1} parent=31 // pred_check_branch
          %183 = sbr.rel (%p181) target = $region36
        $region35: #{tpu_custom_call.1} parent=31 // pred_region
          %s184 = smul.u32 16, %s14
          %s185 = ssub.s32 50, %s184
          %p186 = scmp.lt.s32.totalorder %s185, 16
          %s187 = scalar_select %p186, %s185, 16
          %s188 = smul.u32 128, %s187
          %p189 = scmp.lt.s32.totalorder %s184, 49
          %s190 = scalar_select %p189, %s184, 49
          %s191 = smul.addr %s190, 8
          %s192 = scalar_lea.vmem %s0, %s191
          %s193 = smul.u32 16, %s14
          %s194 = ssub.s32 50, %s193
          %p195 = scmp.lt.s32.totalorder %s194, 16
          %s196 = scalar_select %p195, %s194, 16
          %s197 = smul.u32 128, %s196
        $region36: #{tpu_custom_call.1} parent=31 // pred_fallthru
          _
      $region32: #{tpu_custom_call.1} parent=5 // pred_fallthru
        _
      %p198 = scmp.le.s32.totalorder 1, %s14
      %p199 = scmp.lt.s32.totalorder %s14, 5
      %p200 = pnand %p198, %p199
      %p201 = pneg %p200
      // Predicated region
      $region37: #{tpu_custom_call.1} parent=5 // pred_check
        _
      $region38: #{tpu_custom_call.1} parent=5 // pred_check_branch
        %203 = sbr.rel (%p200) target = $region40
      $region39: #{tpu_custom_call.1} parent=5 // pred_region
        %s204 = ssub.s32 %s14, 1
        %s205 = smul.u32 16, %s19
        %s206 = ssub.s32 50, %s205
        %p207 = scmp.lt.s32.totalorder %s206, 16
        %s208 = scalar_select %p207, %s206, 16
        %s209 = smul.u32 128, %s208
        %p210 = scmp.lt.s32.totalorder %s205, 49
        %s211 = scalar_select %p210, %s205, 49
        %s212 = smul.addr %s211, 8
        %s213 = scalar_lea.vmem %s0, %s212
        %p214 = pneg %p40
        %p215 = pneg %p37
        %p216 = pneg %p61
        %p217 = pneg %p58
        %p218 = pneg %p82
        %p219 = pneg %p79
        %p220 = pneg %p103
        %p221 = pneg %p100
        %p222 = pneg %p124
        %p223 = pneg %p121
        %p224 = pneg %p150
        %p225 = pneg %p147
        %s226 = sand.u32 %s137, 1
        %s227 = scalar_lea.sflag [#allocation3], %s226
        %s228 = sand.u32 %s137, 1
        %s229 = smul.addr %s228, 64
        %s230 = scalar_lea.vmem [#allocation2], %s229
        %s231 = smul.u32 16, %s19
        %s232 = ssub.s32 50, %s231
        %p233 = scmp.lt.s32.totalorder %s232, 16
        %s234 = scalar_select %p233, %s232, 16
        %s235 = smul.u32 128, %s234
        %p236 = scmp.lt.s32.totalorder %s231, 49
        %s237 = scalar_select %p236, %s231, 49
        %s238 = smul.addr %s237, 8
        %s239 = scalar_lea.vmem %s0, %s238
        %s240 = smul.u32 16, %s19
        %s241 = ssub.s32 50, %s240
        %p242 = scmp.lt.s32.totalorder %s241, 16
        %s243 = scalar_select %p242, %s241, 16
        %s244 = smul.u32 128, %s243
        %s245 = smul.u32 16, %s19
        %s246 = ssub.s32 50, %s245
        %p247 = scmp.lt.s32.totalorder %s246, 16
        %s248 = scalar_select %p247, %s246, 16
        %s249 = smul.u32 64, %s248
        %v251 = vld [vmem:[%s239] sm:$0xff]
        %v252 = vld [vmem:[%s239 + $0x8] sm:$0xff]
        %v253 = vld [vmem:[%s239 + $0x10] sm:$0xff]
        %v254 = vld [vmem:[%s239 + $0x18] sm:$0xff]
        %v255 = vld [vmem:[%s239 + $0x20] sm:$0xff]
        %v256 = vld [vmem:[%s239 + $0x28] sm:$0xff]
        %v257 = vld [vmem:[%s239 + $0x30] sm:$0xff]
        %v258 = vld [vmem:[%s239 + $0x38] sm:$0xff]
        %v259 = vld [vmem:[%s239 + $0x40] sm:$0xff]
        %v260 = vld [vmem:[%s239 + $0x48] sm:$0xff]
        %v261 = vld [vmem:[%s239 + $0x50] sm:$0xff]
        %v262 = vld [vmem:[%s239 + $0x58] sm:$0xff]
        %v263 = vld [vmem:[%s239 + $0x60] sm:$0xff]
        %v264 = vld [vmem:[%s239 + $0x68] sm:$0xff]
        %v265 = vld [vmem:[%s239 + $0x70] sm:$0xff]
        %v266 = vld [vmem:[%s239 + $0x78] sm:$0xff]
        %v267 = vpack.c.bf16 %v252, %v251
        %v268 = vpack.c.bf16 %v254, %v253
        %v269 = vpack.c.bf16 %v256, %v255
        %v270 = vpack.c.bf16 %v258, %v257
        %v271 = vpack.c.bf16 %v260, %v259
        %v272 = vpack.c.bf16 %v262, %v261
        %v273 = vpack.c.bf16 %v264, %v263
        %v274 = vpack.c.bf16 %v266, %v265
        %v275 = vld [vmem:[%s1] sm:$0x7]
        %v276 = vld [vmem:[%s2] sm:$0x1]
        %v278 = vlaneseq
        %v279 = vshrl.u32 %v278, 7
        %v280 = vsub.s32 0, %v279
        %v281 = vrot.slane %v276, %v280
        %vm283 = vcmask 48128
        %v285 = vsel %vm283, %v267, 0
        %v288 = vsel %vm283, %v268, 0
        %v291 = vsel %vm283, %v269, 0
        %v294 = vsel %vm283, %v270, 0
        %v297 = vsel %vm283, %v271, 0
        %v300 = vsel %vm283, %v272, 0
        %v303 = vsel %vm283, %v273, 0
        %v306 = vsel %vm283, %v274, 0
        %vm308 = vcmask 1042432
        %v310 = vsel %vm308, %v275, 0
        %312 = vmatprep.subr.bf16.mxu0 0
        %313 = vmatpush1.bf16.msra.mxu0 %v310
        %314 = vmatprep.subr.bf16.mxu0 0
        %315 = vmatpush1.bf16.msra.mxu0 0
        %316 = vmatprep.subr.bf16.mxu0 0
        %317 = vmatpush1.bf16.msra.mxu0 0
        %318 = vmatprep.subr.bf16.mxu0 0
        %319 = vmatpush1.bf16.msra.mxu0 0
        %320 = vmatprep.subr.bf16.mxu0 0
        %321 = vmatpush1.bf16.msra.mxu0 0
        %322 = vmatprep.subr.bf16.mxu0 0
        %323 = vmatpush1.bf16.msra.mxu0 0
        %324 = vmatprep.subr.bf16.mxu0 0
        %325 = vmatpush1.bf16.msra.mxu0 0
        %326 = vmatprep.subr.bf16.mxu0 0
        %327 = vmatpush1.bf16.msra.mxu0 0
        %328 = vmatprep.subr.bf16.mxu0 0
        %329 = vmatpush1.bf16.msra.mxu0 0
        %330 = vmatprep.subr.bf16.mxu0 0
        %331 = vmatpush1.bf16.msra.mxu0 0
        %332 = vmatprep.subr.bf16.mxu0 0
        %333 = vmatpush1.bf16.msra.mxu0 0
        %334 = vmatprep.subr.bf16.mxu0 0
        %335 = vmatpush1.bf16.msra.mxu0 0
        %336 = vmatprep.subr.bf16.mxu0 0
        %337 = vmatpush1.bf16.msra.mxu0 0
        %338 = vmatprep.subr.bf16.mxu0 0
        %339 = vmatpush1.bf16.msra.mxu0 0
        %340 = vmatprep.subr.bf16.mxu0 0
        %341 = vmatpush1.bf16.msra.mxu0 0
        %342 = vmatprep.subr.bf16.mxu0 0
        %343 = vmatpush1.bf16.msra.mxu0 0
        %344 = vmatprep.mubr.bf16.mxu0 0
        %345 = vmatmul.mubr.bf16.gmra.mrb[0].mxu0 %v285
        %v346 = vpop.f32.mrb[0].mxu0
        %v347 = vadd.f32 %v281, %v346
        %v348 = vpop.f32.mrb[0].mxu0
        %v349 = vpop.f32.mrb[0].mxu0
        %v350 = vadd.f32 %v281, %v349
        %v351 = vpop.f32.mrb[0].mxu0
        %352 = vmatprep.mubr.bf16.mxu0 0
        %353 = vmatmul.mubr.bf16.gmra.mrb[0].mxu0 %v288
        %v354 = vpop.f32.mrb[0].mxu0
        %v355 = vadd.f32 %v281, %v354
        %v356 = vpop.f32.mrb[0].mxu0
        %v357 = vpop.f32.mrb[0].mxu0
        %v358 = vadd.f32 %v281, %v357
        %v359 = vpop.f32.mrb[0].mxu0
        %360 = vmatprep.mubr.bf16.mxu0 0
        %361 = vmatmul.mubr.bf16.gmra.mrb[0].mxu0 %v291
        %v362 = vpop.f32.mrb[0].mxu0
        %v363 = vadd.f32 %v281, %v362
        %v364 = vpop.f32.mrb[0].mxu0
        %v365 = vpop.f32.mrb[0].mxu0
        %v366 = vadd.f32 %v281, %v365
        %v367 = vpop.f32.mrb[0].mxu0
        %368 = vmatprep.mubr.bf16.mxu0 0
        %369 = vmatmul.mubr.bf16.gmra.mrb[0].mxu0 %v294
        %v370 = vpop.f32.mrb[0].mxu0
        %v371 = vadd.f32 %v281, %v370
        %v372 = vpop.f32.mrb[0].mxu0
        %v373 = vpop.f32.mrb[0].mxu0
        %v374 = vadd.f32 %v281, %v373
        %v375 = vpop.f32.mrb[0].mxu0
        %376 = vmatprep.mubr.bf16.mxu0 0
        %377 = vmatmul.mubr.bf16.gmra.mrb[0].mxu0 %v297
        %v378 = vpop.f32.mrb[0].mxu0
        %v379 = vadd.f32 %v281, %v378
        %v380 = vpop.f32.mrb[0].mxu0
        %v381 = vpop.f32.mrb[0].mxu0
        %v382 = vadd.f32 %v281, %v381
        %v383 = vpop.f32.mrb[0].mxu0
        %384 = vmatprep.mubr.bf16.mxu0 0
        %385 = vmatmul.mubr.bf16.gmra.mrb[0].mxu0 %v300
        %v386 = vpop.f32.mrb[0].mxu0
        %v387 = vadd.f32 %v281, %v386
        %v388 = vpop.f32.mrb[0].mxu0
        %v389 = vpop.f32.mrb[0].mxu0
        %v390 = vadd.f32 %v281, %v389
        %v391 = vpop.f32.mrb[0].mxu0
        %392 = vmatprep.mubr.bf16.mxu0 0
        %393 = vmatmul.mubr.bf16.gmra.mrb[0].mxu0 %v303
        %v394 = vpop.f32.mrb[0].mxu0
        %v395 = vadd.f32 %v281, %v394
        %v396 = vpop.f32.mrb[0].mxu0
        %v397 = vpop.f32.mrb[0].mxu0
        %v398 = vadd.f32 %v281, %v397
        %v399 = vpop.f32.mrb[0].mxu0
        %400 = vmatprep.mubr.bf16.mxu0 0
        %401 = vmatmul.mubr.bf16.gmra.mrb[0].mxu0 %v306
        %v402 = vpop.f32.mrb[0].mxu0
        %v403 = vadd.f32 %v281, %v402
        %v404 = vpop.f32.mrb[0].mxu0
        %v405 = vpop.f32.mrb[0].mxu0
        %v406 = vadd.f32 %v281, %v405
        %v407 = vpop.f32.mrb[0].mxu0
        %408 = vdwg.mxu0
        %v409 = vmax.f32 %v347, 0.0
        %v410 = vmax.f32 %v350, 0.0
        %v411 = vmax.f32 %v355, 0.0
        %v412 = vmax.f32 %v358, 0.0
        %v413 = vmax.f32 %v363, 0.0
        %v414 = vmax.f32 %v366, 0.0
        %v415 = vmax.f32 %v371, 0.0
        %v416 = vmax.f32 %v374, 0.0
        %v417 = vmax.f32 %v379, 0.0
        %v418 = vmax.f32 %v382, 0.0
        %v419 = vmax.f32 %v387, 0.0
        %v420 = vmax.f32 %v390, 0.0
        %v421 = vmax.f32 %v395, 0.0
        %v422 = vmax.f32 %v398, 0.0
        %v423 = vmax.f32 %v403, 0.0
        %v424 = vmax.f32 %v406, 0.0
        %v425 = vpack.c.bf16 %v410, %v409
        %v426 = vpack.c.bf16 %v412, %v411
        %v427 = vpack.c.bf16 %v414, %v413
        %v428 = vpack.c.bf16 %v416, %v415
        %v429 = vpack.c.bf16 %v418, %v417
        %v430 = vpack.c.bf16 %v420, %v419
        %v431 = vpack.c.bf16 %v422, %v421
        %v432 = vpack.c.bf16 %v424, %v423
        %v433 = vld [vmem:[%s3] sm:$0xf]
        %v434 = vld [vmem:[%s3 + $0x4] sm:$0xf]
        %v435 = vld [vmem:[%s3 + $0x8] sm:$0xf]
        %v436 = vld [vmem:[%s3 + $0xc] sm:$0xf]
        %v437 = vld [vmem:[%s3 + $0x10] sm:$0xf]
        %v438 = vld [vmem:[%s3 + $0x14] sm:$0xf]
        %v439 = vld [vmem:[%s3 + $0x18] sm:$0xf]
        %v440 = vld [vmem:[%s3 + $0x1c] sm:$0xf]
        %v441 = vld [vmem:[%s3 + $0x20] sm:$0xf]
        %v442 = vld [vmem:[%s3 + $0x24] sm:$0xf]
        %v443 = vld [vmem:[%s3 + $0x28] sm:$0xf]
        %v444 = vld [vmem:[%s3 + $0x2c] sm:$0xf]
        %v445 = vld [vmem:[%s3 + $0x30] sm:$0xf]
        %v446 = vld [vmem:[%s3 + $0x34] sm:$0xf]
        %v447 = vld [vmem:[%s3 + $0x38] sm:$0xf]
        %v448 = vld [vmem:[%s3 + $0x3c] sm:$0xf]
        %v449 = vld [vmem:[%s4] sm:$0x1]
        %v451 = vlaneseq
        %v452 = vshrl.u32 %v451, 7
        %v453 = vsub.s32 0, %v452
        %v454 = vrot.slane %v449, %v453
        %v472 = vunpack.c.l.b16 %v433
        %v473 = vunpack.c.l.b16 %v434
        %v474 = vunpack.c.l.b16 %v435
        %v475 = vunpack.c.l.b16 %v436
        %v476 = vunpack.c.l.b16 %v437
        %v477 = vunpack.c.l.b16 %v438
        %v478 = vunpack.c.l.b16 %v439
        %v479 = vunpack.c.l.b16 %v440
        %v480 = vunpack.c.l.b16 %v441
        %v481 = vunpack.c.l.b16 %v442
        %v482 = vunpack.c.l.b16 %v443
        %v483 = vunpack.c.l.b16 %v444
        %v484 = vunpack.c.l.b16 %v445
        %v485 = vunpack.c.l.b16 %v446
        %v486 = vunpack.c.l.b16 %v447
        %v487 = vunpack.c.l.b16 %v448
        %v488 = vpack.c.b16 %v473, %v472
        %v489 = vpack.c.b16 %v475, %v474
        %v490 = vpack.c.b16 %v477, %v476
        %v491 = vpack.c.b16 %v479, %v478
        %v492 = vpack.c.b16 %v481, %v480
        %v493 = vpack.c.b16 %v483, %v482
        %v494 = vpack.c.b16 %v485, %v484
        %v495 = vpack.c.b16 %v487, %v486
        %504 = vmatprep.subr.bf16.mxu0 0
        %505 = vmatpush1.bf16.msra.mxu0 %v488
        %506 = vmatprep.subr.bf16.mxu0 0
        %507 = vmatpush1.bf16.msra.mxu0 %v489
        %508 = vmatprep.subr.bf16.mxu0 0
        %509 = vmatpush1.bf16.msra.mxu0 %v490
        %510 = vmatprep.subr.bf16.mxu0 0
        %511 = vmatpush1.bf16.msra.mxu0 %v491
        %512 = vmatprep.subr.bf16.mxu0 0
        %513 = vmatpush1.bf16.msra.mxu0 %v492
        %514 = vmatprep.subr.bf16.mxu0 0
        %515 = vmatpush1.bf16.msra.mxu0 %v493
        %516 = vmatprep.subr.bf16.mxu0 0
        %517 = vmatpush1.bf16.msra.mxu0 %v494
        %518 = vmatprep.subr.bf16.mxu0 0
        %519 = vmatpush1.bf16.msra.mxu0 %v495
        %520 = vmatprep.subr.bf16.mxu0 0
        %521 = vmatpush1.bf16.msra.mxu0 0
        %522 = vmatprep.subr.bf16.mxu0 0
        %523 = vmatpush1.bf16.msra.mxu0 0
        %524 = vmatprep.subr.bf16.mxu0 0
        %525 = vmatpush1.bf16.msra.mxu0 0
        %526 = vmatprep.subr.bf16.mxu0 0
        %527 = vmatpush1.bf16.msra.mxu0 0
        %528 = vmatprep.subr.bf16.mxu0 0
        %529 = vmatpush1.bf16.msra.mxu0 0
        %530 = vmatprep.subr.bf16.mxu0 0
        %531 = vmatpush1.bf16.msra.mxu0 0
        %532 = vmatprep.subr.bf16.mxu0 0
        %533 = vmatpush1.bf16.msra.mxu0 0
        %534 = vmatprep.subr.bf16.mxu0 0
        %535 = vmatpush1.bf16.msra.mxu0 0
        %536 = vmatprep.mubr.bf16.mxu0 0
        %537 = vmatmul.mubr.bf16.gmra.mrb[0].mxu0 %v425
        %v538 = vpop.f32.mrb[0].mxu0
        %v539 = vadd.f32 %v454, %v538
        %v540 = vpop.f32.mrb[0].mxu0
        %v541 = vpop.f32.mrb[0].mxu0
        %v542 = vadd.f32 %v454, %v541
        %v543 = vpop.f32.mrb[0].mxu0
        %544 = vmatprep.mubr.bf16.mxu0 0
        %545 = vmatmul.mubr.bf16.gmra.mrb[0].mxu0 %v426
        %v546 = vpop.f32.mrb[0].mxu0
        %v547 = vadd.f32 %v454, %v546
        %v548 = vpop.f32.mrb[0].mxu0
        %v549 = vpop.f32.mrb[0].mxu0
        %v550 = vadd.f32 %v454, %v549
        %v551 = vpop.f32.mrb[0].mxu0
        %552 = vmatprep.mubr.bf16.mxu0 0
        %553 = vmatmul.mubr.bf16.gmra.mrb[0].mxu0 %v427
        %v554 = vpop.f32.mrb[0].mxu0
        %v555 = vadd.f32 %v454, %v554
        %v556 = vpop.f32.mrb[0].mxu0
        %v557 = vpop.f32.mrb[0].mxu0
        %v558 = vadd.f32 %v454, %v557
        %v559 = vpop.f32.mrb[0].mxu0
        %560 = vmatprep.mubr.bf16.mxu0 0
        %561 = vmatmul.mubr.bf16.gmra.mrb[0].mxu0 %v428
        %v562 = vpop.f32.mrb[0].mxu0
        %v563 = vadd.f32 %v454, %v562
        %v564 = vpop.f32.mrb[0].mxu0
        %v565 = vpop.f32.mrb[0].mxu0
        %v566 = vadd.f32 %v454, %v565
        %v567 = vpop.f32.mrb[0].mxu0
        %568 = vmatprep.mubr.bf16.mxu0 0
        %569 = vmatmul.mubr.bf16.gmra.mrb[0].mxu0 %v429
        %v570 = vpop.f32.mrb[0].mxu0
        %v571 = vadd.f32 %v454, %v570
        %v572 = vpop.f32.mrb[0].mxu0
        %v573 = vpop.f32.mrb[0].mxu0
        %v574 = vadd.f32 %v454, %v573
        %v575 = vpop.f32.mrb[0].mxu0
        %576 = vmatprep.mubr.bf16.mxu0 0
        %577 = vmatmul.mubr.bf16.gmra.mrb[0].mxu0 %v430
        %v578 = vpop.f32.mrb[0].mxu0
        %v579 = vadd.f32 %v454, %v578
        %v580 = vpop.f32.mrb[0].mxu0
        %v581 = vpop.f32.mrb[0].mxu0
        %v582 = vadd.f32 %v454, %v581
        %v583 = vpop.f32.mrb[0].mxu0
        %584 = vmatprep.mubr.bf16.mxu0 0
        %585 = vmatmul.mubr.bf16.gmra.mrb[0].mxu0 %v431
        %v586 = vpop.f32.mrb[0].mxu0
        %v587 = vadd.f32 %v454, %v586
        %v588 = vpop.f32.mrb[0].mxu0
        %v589 = vpop.f32.mrb[0].mxu0
        %v590 = vadd.f32 %v454, %v589
        %v591 = vpop.f32.mrb[0].mxu0
        %592 = vmatprep.mubr.bf16.mxu0 0
        %593 = vmatmul.mubr.bf16.gmra.mrb[0].mxu0 %v432
        %v594 = vpop.f32.mrb[0].mxu0
        %v595 = vadd.f32 %v454, %v594
        %v596 = vpop.f32.mrb[0].mxu0
        %v597 = vpop.f32.mrb[0].mxu0
        %v598 = vadd.f32 %v454, %v597
        %v599 = vpop.f32.mrb[0].mxu0
        %600 = vdwg.mxu0
        %v601 = vpack.c.bf16 %v542, %v539
        %v602 = vpack.c.bf16 %v550, %v547
        %v603 = vpack.c.bf16 %v558, %v555
        %v604 = vpack.c.bf16 %v566, %v563
        %v605 = vpack.c.bf16 %v574, %v571
        %v606 = vpack.c.bf16 %v582, %v579
        %v607 = vpack.c.bf16 %v590, %v587
        %v608 = vpack.c.bf16 %v598, %v595
        %v617 = vunpack.c.l.b16 %v601
        %v618 = vunpack.c.h.b16 %v601
        %v619 = vunpack.c.l.b16 %v602
        %v620 = vunpack.c.h.b16 %v602
        %v621 = vunpack.c.l.b16 %v603
        %v622 = vunpack.c.h.b16 %v603
        %v623 = vunpack.c.l.b16 %v604
        %v624 = vunpack.c.h.b16 %v604
        %v625 = vunpack.c.l.b16 %v605
        %v626 = vunpack.c.h.b16 %v605
        %v627 = vunpack.c.l.b16 %v606
        %v628 = vunpack.c.h.b16 %v606
        %v629 = vunpack.c.l.b16 %v607
        %v630 = vunpack.c.h.b16 %v607
        %v631 = vunpack.c.l.b16 %v608
        %v632 = vunpack.c.h.b16 %v608
        %v633 = vpack.c.b16 %v617, %v617
        %v634 = vpack.c.b16 %v618, %v618
        %v635 = vpack.c.b16 %v619, %v619
        %v636 = vpack.c.b16 %v620, %v620
        %v637 = vpack.c.b16 %v621, %v621
        %v638 = vpack.c.b16 %v622, %v622
        %v639 = vpack.c.b16 %v623, %v623
        %v640 = vpack.c.b16 %v624, %v624
        %v641 = vpack.c.b16 %v625, %v625
        %v642 = vpack.c.b16 %v626, %v626
        %v643 = vpack.c.b16 %v627, %v627
        %v644 = vpack.c.b16 %v628, %v628
        %v645 = vpack.c.b16 %v629, %v629
        %v646 = vpack.c.b16 %v630, %v630
        %v647 = vpack.c.b16 %v631, %v631
        %v648 = vpack.c.b16 %v632, %v632
        %665 = vst [vmem:[%s230] sm:$0xf] %v633
        %666 = vst [vmem:[%s230 + $0x4] sm:$0xf] %v634
        %667 = vst [vmem:[%s230 + $0x8] sm:$0xf] %v635
        %668 = vst [vmem:[%s230 + $0xc] sm:$0xf] %v636
        %669 = vst [vmem:[%s230 + $0x10] sm:$0xf] %v637
        %670 = vst [vmem:[%s230 + $0x14] sm:$0xf] %v638
        %671 = vst [vmem:[%s230 + $0x18] sm:$0xf] %v639
        %672 = vst [vmem:[%s230 + $0x1c] sm:$0xf] %v640
        %673 = vst [vmem:[%s230 + $0x20] sm:$0xf] %v641
        %674 = vst [vmem:[%s230 + $0x24] sm:$0xf] %v642
        %675 = vst [vmem:[%s230 + $0x28] sm:$0xf] %v643
        %676 = vst [vmem:[%s230 + $0x2c] sm:$0xf] %v644
        %677 = vst [vmem:[%s230 + $0x30] sm:$0xf] %v645
        %678 = vst [vmem:[%s230 + $0x34] sm:$0xf] %v646
        %679 = vst [vmem:[%s230 + $0x38] sm:$0xf] %v647
        %680 = vst [vmem:[%s230 + $0x3c] sm:$0xf] %v648
        %s681 = sand.u32 %s137, 1
        %s682 = scalar_lea.sflag [#allocation3], %s681
        %s683 = sand.u32 %s137, 1
        %s684 = smul.addr %s683, 64
        %s685 = scalar_lea.vmem [#allocation2], %s684
        // Predicated region
        $region41: #{tpu_custom_call.1} parent=39 // pred_check
          %p686 = pneg %p147
        $region42: #{tpu_custom_call.1} parent=39 // pred_check_branch
          %688 = sbr.rel (%p686) target = $region44
        $region43: #{tpu_custom_call.1} parent=39 // pred_region
          %s689 = smul.u32 16, %s19
          %s690 = ssub.s32 50, %s689
          %p691 = scmp.lt.s32.totalorder %s690, 16
          %s692 = scalar_select %p691, %s690, 16
          %s693 = smul.u32 64, %s692
          %s695 = ssub.s32 1024, %s693
          %696 = vsyncadd %s682, %s695
          %p697 = scmp.ne.s32.totalorder 0, %s693
          %s698 = smul.addr %s689, 64
          %s699 = scalar_lea.hbm %s5, %s698
          %s700 = smul.u32 4, %s692
          %s701 = sshll.u32 %s685, 4
          %s702 = int_to_ptr.vmem [resolvable:$true] %s701
          %s703 = sshll.u32 %s700, 4
          %707 = dma.vmem_to_hbm [thread:$0]  (%p697), %s702, %s703, %s699, %s682, 64, 64, 4
        $region44: #{tpu_custom_call.1} parent=39 // pred_fallthru
          _
      $region40: #{tpu_custom_call.1} parent=5 // pred_fallthru
        _
      %p708 = scmp.le.s32.totalorder 2, %s14
      // Predicated region
      $region45: #{tpu_custom_call.1} parent=5 // pred_check
        %p709 = pneg %p708
      $region46: #{tpu_custom_call.1} parent=5 // pred_check_branch
        %711 = sbr.rel (%p709) target = $region48
      $region47: #{tpu_custom_call.1} parent=5 // pred_region
        %s712 = ssub.s32 %s14, 2
        // Predicated region
        $region49: #{tpu_custom_call.1} parent=47 // pred_check
          %p713 = pneg %p153
        $region50: #{tpu_custom_call.1} parent=47 // pred_check_branch
          %715 = sbr.rel (%p713) target = $region52
        $region51: #{tpu_custom_call.1} parent=47 // pred_region
          %s716 = sand.u32 %s138, 1
          %s717 = scalar_lea.sflag [#allocation3], %s716
          %s718 = sand.u32 %s138, 1
          %s719 = smul.addr %s718, 64
          %s720 = scalar_lea.vmem [#allocation2], %s719
          %721 = dma.done %s717, 1024
        $region52: #{tpu_custom_call.1} parent=47 // pred_fallthru
          _
      $region48: #{tpu_custom_call.1} parent=5 // pred_fallthru
        _
    $region6: #{tpu_custom_call.1} parent=1 // loop_footer
      %s18 = sadd.s32 1, %s14
    $region7: #{tpu_custom_call.1} parent=1 // loop_footer_branch
      %13 = sbr.rel target = $region3
    $region8: #{tpu_custom_call.1} parent=1 // loop_exit
      _
    %722 = vsyncpa [#allocation3], 1
    %s723 = scalar_lea.sflag [#allocation3], 1
    %724 = vsyncpa %s723, 1

</llo_original>
